<compile_context>
chip_gen: v5e
topology: v5e:2x2
jax: 0.10.0
libtpu: 0.0.40
codegen_flags: <defaults>
</compile_context>

<pallas_src>
import jax
import jax.numpy as jnp
from jax import lax
from jax.experimental import pallas as pl
from jax.experimental.pallas import tpu as pltpu

LANE = 128        # vreg lane width
SUB = 8           # vreg sublane count
CHUNK_ROWS = 512  # rows per inner accumulation chunk (bounds f32 temps to ~256 KiB)
ACC_ROWS = 64     # 8 independent (8,128) accumulator slabs


def _round_up(x, m):
    return -(-x // m) * m


def _sumsq_rows(x_ref, nrows):
    """Sum of squares of x_ref[0:nrows, :], folded to an (8, 128) f32 slab.

    `nrows` is a static Python int and must be a positive multiple of SUB.
    f32 temporaries are bounded to one CHUNK_ROWS-row chunk at a time.
    """
    assert nrows > 0 and nrows % SUB == 0
    nchunks, rem = divmod(nrows, CHUNK_ROWS)

    if nchunks > 0:
        def body(c, acc):
            start = pl.multiple_of(c * CHUNK_ROWS, CHUNK_ROWS)
            x = x_ref[pl.ds(start, CHUNK_ROWS), :].astype(jnp.float32)
            # (CHUNK,128)->(CHUNK/ACC,ACC,128) is layout-free; axis-0 reduce is
            # plain VPU vector adds spread over 8 independent accumulator slabs.
            return acc + jnp.sum((x * x).reshape(-1, ACC_ROWS, LANE), axis=0)

        acc = lax.fori_loop(0, nchunks, body,
                            jnp.zeros((ACC_ROWS, LANE), jnp.float32),
                            unroll=nchunks <= 8)
        total = jnp.sum(acc.reshape(-1, SUB, LANE), axis=0)
    else:
        total = jnp.zeros((SUB, LANE), jnp.float32)

    if rem > 0:  # static remainder, multiple of SUB
        x = x_ref[pl.ds(nchunks * CHUNK_ROWS, rem), :].astype(jnp.float32)
        total = total + jnp.sum((x * x).reshape(-1, SUB, LANE), axis=0)
    return total


def _make_partial_kernel(br, n_blocks, last_valid):
    """Kernel producing one (8,128) partial sum-of-squares slab per grid step."""
    ragged = last_valid != br

    def kernel(x_ref, out_ref):
        if not ragged:
            out_ref[...] = _sumsq_rows(x_ref, br)
            return

        i = pl.program_id(0)

        @pl.when(i < n_blocks - 1)
        def _():
            out_ref[...] = _sumsq_rows(x_ref, br)

        @pl.when(i == n_blocks - 1)
        def _():
            r8 = (last_valid // SUB) * SUB
            total = (_sumsq_rows(x_ref, r8) if r8 > 0
                     else jnp.zeros((SUB, LANE), jnp.float32))
            rem = last_valid - r8
            if rem > 0:
                # The edge DMA only fills the valid rows of the block buffer;
                # rows >= rem in this last 8-row group hold stale data -> mask
                # them to zero BEFORE squaring (also neutralizes any stale NaNs).
                x = x_ref[pl.ds(r8, SUB), :].astype(jnp.float32)
                row_ids = lax.broadcasted_iota(jnp.int32, (SUB, LANE), 0)
                x = jnp.where(row_ids < rem, x, 0.0)
                total = total + x * x
            out_ref[...] = total

    return kernel


def magnitude_mse_loss(w, *, target_block_bytes=4 * 1024 * 1024):
    """MagnitudeLoss with MSE: mean(w**2) over all elements of w."""
    n = int(w.size)
    wf = w.reshape(-1)                      # free (bitcast) for contiguous w
    n_bulk = (n // LANE) * LANE
    rows = n_bulk // LANE

    if rows < SUB:
        # Tiny input: one fused XLA reduce beats any kernel launch.
        return jnp.sum(wf.astype(jnp.float32) ** 2) / jnp.float32(n)

    tail_sum = jnp.float32(0.0)
    if n_bulk < n:
        # Rare unaligned case (n % 128 != 0): sub-row tail (<128 elems) is summed
        # on the XLA side. Only in this case does the bulk prefix slice below cost
        # one extra pass; the common aligned case is fully copy-free.
        tail_sum = jnp.sum(wf[n_bulk:].astype(jnp.float32) ** 2)
        bulk = wf[:n_bulk]
    else:
        bulk = wf
    x2d = bulk.reshape(rows, LANE)          # free when n % 128 == 0

    # ---- block-size selection ------------------------------------------------
    itemsize = jnp.dtype(w.dtype).itemsize
    target_rows = max(
        CHUNK_ROWS,
        (target_block_bytes // (LANE * itemsize)) // CHUNK_ROWS * CHUNK_ROWS)
    # At least 2 balanced blocks whenever there is enough data, so the "parallel"
    # grid axis keeps both v7x TensorCores (and their DMA paths) busy.
    n_blocks_goal = max(2, -(-rows // target_rows)) if rows > SUB else 1
    br = _round_up(-(-rows // n_blocks_goal), SUB)
    n_blocks = -(-rows // br)
    last_valid = rows - (n_blocks - 1) * br

    partials = pl.pallas_call(
        _make_partial_kernel(br, n_blocks, last_valid),
        out_shape=jax.ShapeDtypeStruct((n_blocks * SUB, LANE), jnp.float32),
        grid_spec=pltpu.PrefetchScalarGridSpec(
            num_scalar_prefetch=0,
            grid=(n_blocks,),
            in_specs=[pl.BlockSpec((br, LANE), lambda i: (i, 0))],
            out_specs=pl.BlockSpec((SUB, LANE), lambda i: (i, 0)),
        ),
        compiler_params=pltpu.CompilerParams(
            dimension_semantics=("parallel",),
            vmem_limit_bytes=32 * 1024 * 1024,
        ),
    )(x2d)

    # Tiny final reduction + normalization by the TRUE element count.
    return (jnp.sum(partials) + tail_sum) / jnp.float32(n)


def _reference(w):
    return jnp.mean(w.astype(jnp.float32) ** 2)


if __name__ == "__main__":
    key = jax.random.PRNGKey(0)
    k0, k1, k2, k3 = jax.random.split(key, 4)

    # Main example consistent with the module's forward(w): 2048 elems -> 2 blocks.
    w = jax.random.normal(k0, (2, 4, 16, 16), dtype=jnp.float32)
    out = jax.block_until_ready(magnitude_mse_loss(w))
    ref = jax.block_until_ready(_reference(w))
    assert jnp.allclose(out, ref, rtol=1e-5, atol=1e-6), (out, ref)

    # n % 128 == 0 but rows % br != 0 -> exercises the masked ragged last block.
    w2 = jax.random.normal(k1, (3, 5, 128), dtype=jnp.float32)
    out2 = jax.block_until_ready(magnitude_mse_loss(w2))
    ref2 = jax.block_until_ready(_reference(w2))
    assert jnp.allclose(out2, ref2, rtol=1e-5, atol=1e-6), (out2, ref2)

    # n % 128 != 0 with a kernel-sized bulk -> exercises bulk kernel + XLA tail.
    w3 = jax.random.normal(k2, (9, 130), dtype=jnp.float32)
    out3 = jax.block_until_ready(magnitude_mse_loss(w3))
    ref3 = jax.block_until_ready(_reference(w3))
    assert jnp.allclose(out3, ref3, rtol=1e-5, atol=1e-6), (out3, ref3)

    # Tiny unaligned input -> pure XLA path.
    w4 = jax.random.normal(k3, (3, 5, 7), dtype=jnp.float32)
    out4 = jax.block_until_ready(magnitude_mse_loss(w4))
    ref4 = jax.block_until_ready(_reference(w4))
    assert jnp.allclose(out4, ref4, rtol=1e-5, atol=1e-6), (out4, ref4)

    print("KERNEL_OK")
</pallas_src>

<mosaic_0001>
module attributes {stable_mosaic.version = 11 : i64} {
  func.func @kernel(%arg0: i32, %arg1: memref<8x128xf32, #tpu.memory_space<vmem>>, %arg2: memref<8x128xf32, #tpu.memory_space<vmem>>) attributes {dimension_semantics = [#tpu.dimension_semantics<parallel>], iteration_bounds = array<i64: 2>, scalar_prefetch = 0 : i64, scratch_operands = 0 : i64, tpu.core_type = #tpu.core_type<tc>, window_params = [{transform_indices = @transform_0, window_bounds = array<i64: 8, 128>}, {transform_indices = @transform_1, window_bounds = array<i64: 8, 128>}]} {
    %cst = arith.constant 0.000000e+00 : f32
    %0 = vector.broadcast %cst : f32 to vector<8x128xf32>
    %c0 = arith.constant 0 : index
    %c0_0 = arith.constant 0 : index
    %1 = vector.load %arg1[%c0, %c0_0] : memref<8x128xf32, #tpu.memory_space<vmem>>, vector<8x128xf32>
    %2 = arith.mulf %1, %1 : vector<8x128xf32>
    %3 = vector.shape_cast %2 : vector<8x128xf32> to vector<1x8x128xf32>
    %cst_1 = arith.constant dense<0.000000e+00> : vector<8x128xf32>
    %4 = vector.multi_reduction <add>, %3, %cst_1 [0] : vector<1x8x128xf32> to vector<8x128xf32>
    %5 = arith.addf %0, %4 : vector<8x128xf32>
    %c0_2 = arith.constant 0 : index
    %c0_3 = arith.constant 0 : index
    %6 = vector.load %arg2[%c0_2, %c0_3] : memref<8x128xf32, #tpu.memory_space<vmem>>, vector<8x128xf32>
    tpu.vector_store %arg2[%c0_2, %c0_3], %5 {strides = array<i32>} : memref<8x128xf32, #tpu.memory_space<vmem>>, vector<8x128xf32>,
    return
  }
  func.func @transform_0(%arg0: i32) -> (i32, i32) {
    %c0_i32 = arith.constant 0 : i32
    %c0_i32_0 = arith.constant 0 : i32
    return %arg0, %c0_i32 : i32, i32
  }
  func.func @transform_1(%arg0: i32) -> (i32, i32) {
    %c0_i32 = arith.constant 0 : i32
    %c0_i32_0 = arith.constant 0 : i32
    return %arg0, %c0_i32 : i32, i32
  }
}

</mosaic_0001>

<llo_original>
// kernel: tpu_custom_call.1
$region0: #{tpu_custom_call.1}
  #allocation0 [shape = 'u32[]', space=smem, size = 0x4, offset = 0x4, fixed_abs, tag = 'smem constant byte address 0x4 - core index']
  #allocation1 [shape = 'u32[72,128]{1,0:T(1,128)}', space=vmem, size = 0x9000, scoped, tag = 'internal scratch']
  %s0 = inlined_call_operand.hbm [shape: f32[16,128], index: 0, kind: input, shape index: {}]
  %s1 = inlined_call_operand.hbm [shape: f32[16,128], index: 1, kind: output, shape index: {}]
  %s2 = sld [smem:[#allocation0]]
  $region41: #{tpu_custom_call.1} parent=0
    _
  %s4 = ssub.s32 1, %s2
  %s5 = scalar_select 0, %s4, %s2
  $region1: #{tpu_custom_call.1} parent=0
    #allocation2 [shape = 'u8[8192]{0}', space=vmem, size = 0x2000, scoped, tag = 'input window, operand 0']
    #allocation3 [shape = 's32[2]{0}', space=sflag, size = 0x8, scoped, tag = 'scoped memory for tpu_custom_call.1']
    #allocation4 [shape = 's32[2]{0}', space=sflag, size = 0x8, scoped, tag = 'scoped memory for tpu_custom_call.1']
    #allocation5 [shape = 'u8[8192]{0}', space=vmem, size = 0x2000, scoped, tag = 'output window, operand 0']
    %6 = vsyncpa [#allocation3], 0
    %s7 = scalar_lea.sflag [#allocation3], 1
    %8 = vsyncpa %s7, 0
    %9 = vsyncpa [#allocation4], 0
    %s10 = scalar_lea.sflag [#allocation4], 1
    %11 = vsyncpa %s10, 0
    loop: start=0, step=1, limit=4
    $region2: #{tpu_custom_call.1} parent=1 // loop_pre_header
      _
    $region3: #{tpu_custom_call.1} parent=1 // loop_header
      %s13 = sphi 0, %s17
      %p14 = scmp.ge.s32.totalorder %s13, 4
      %s23 = sphi 0, %s25
      %s26 = sphi 0, %s23
      %s27 = sphi 0, %s26
      %s43 = sphi 0, %s27
      %s49 = sphi 0, %s51
      %s52 = sphi 0, %s49
      %s53 = sphi 0, %s52
      %s69 = sphi 0, %s53
    $region4: #{tpu_custom_call.1} parent=1 // loop_header_branch
      %16 = sbr.rel (%p14) target = $region8
    $region5: #{tpu_custom_call.1} parent=1 // loop_body
      %s18 = ssub.s32 %s13, 1
      %s19 = ssub.s32 %s13, 2
      %s20 = sadd.s32 %s13, 1
      %s21 = ssub.s32 %s13, %s20
      %p22 = scmp.eq.s32.totalorder %s21, 0
      %s24 = sadd.s32 %s23, 1
      %s25 = scalar_select %p22, %s23, %s24
      %p28 = pneg %p22
      %p29 = scmp.eq.s32.totalorder %s13, 1
      %p30 = por %p28, %p29
      %p31 = scmp.ne.s32.totalorder %s23, %s26
      %p32 = scmp.eq.s32.totalorder %s13, 0
      %p33 = por %p31, %p32
      %p34 = scmp.ne.s32.totalorder %s23, %s26
      %p35 = scmp.eq.s32.totalorder %s18, 1
      %p36 = por %p34, %p35
      %p37 = scmp.ne.s32.totalorder %s26, %s27
      %p38 = scmp.eq.s32.totalorder %s18, 0
      %p39 = por %p37, %p38
      %p40 = scmp.ne.s32.totalorder %s26, %s27
      %p41 = scmp.eq.s32.totalorder %s19, 1
      %p42 = por %p40, %p41
      %p44 = scmp.ne.s32.totalorder %s27, %s43
      %p45 = scmp.eq.s32.totalorder %s19, 0
      %p46 = por %p44, %p45
      %s47 = ssub.s32 %s13, %s20
      %p48 = scmp.eq.s32.totalorder %s47, 0
      %s50 = sadd.s32 %s49, 1
      %s51 = scalar_select %p48, %s49, %s50
      %p54 = pneg %p48
      %p55 = scmp.eq.s32.totalorder %s13, 1
      %p56 = por %p54, %p55
      %p57 = scmp.ne.s32.totalorder %s49, %s52
      %p58 = scmp.eq.s32.totalorder %s13, 0
      %p59 = por %p57, %p58
      %p60 = scmp.ne.s32.totalorder %s49, %s52
      %p61 = scmp.eq.s32.totalorder %s18, 1
      %p62 = por %p60, %p61
      %p63 = scmp.ne.s32.totalorder %s52, %s53
      %p64 = scmp.eq.s32.totalorder %s18, 0
      %p65 = por %p63, %p64
      %p66 = scmp.ne.s32.totalorder %s52, %s53
      %p67 = scmp.eq.s32.totalorder %s19, 1
      %p68 = por %p66, %p67
      %p70 = scmp.ne.s32.totalorder %s53, %s69
      %p71 = scmp.eq.s32.totalorder %s19, 0
      %p72 = por %p70, %p71
      %p73 = scmp.le.s32.totalorder 1, %s13
      %p74 = scmp.lt.s32.totalorder %s13, 3
      %p75 = pnand %p73, %p74
      %p76 = pneg %p75
      // Predicated region
      $region9: #{tpu_custom_call.1} parent=5 // pred_check
        _
      $region10: #{tpu_custom_call.1} parent=5 // pred_check_branch
        %78 = sbr.rel (%p75) target = $region12
      $region11: #{tpu_custom_call.1} parent=5 // pred_region
        %s79 = ssub.s32 %s13, 1
      $region12: #{tpu_custom_call.1} parent=5 // pred_fallthru
        _
      %p80 = scmp.lt.s32.totalorder %s13, 2
      // Predicated region
      $region13: #{tpu_custom_call.1} parent=5 // pred_check
        %p81 = pneg %p80
      $region14: #{tpu_custom_call.1} parent=5 // pred_check_branch
        %83 = sbr.rel (%p81) target = $region16
      $region15: #{tpu_custom_call.1} parent=5 // pred_region
        // Predicated region
        $region17: #{tpu_custom_call.1} parent=15 // pred_check
          %p84 = pneg %p33
        $region18: #{tpu_custom_call.1} parent=15 // pred_check_branch
          %86 = sbr.rel (%p84) target = $region20
        $region19: #{tpu_custom_call.1} parent=15 // pred_region
          %s87 = sand.u32 %s23, 1
          %s88 = scalar_lea.sflag [#allocation3], %s87
          %s89 = sand.u32 %s23, 1
          %s90 = smul.addr %s89, 8
          %s91 = scalar_lea.vmem [#allocation2], %s90
          %93 = vsyncadd %s88, 0
          %s94 = smul.addr %s13, 8
          %s95 = scalar_lea.hbm %s0, %s94
          %s97 = sshll.u32 %s95, 4
          %s98 = int_to_ptr.hbm [resolvable:$true] %s97
          %s99 = sshll.u32 %s91, 4
          %s100 = int_to_ptr.vmem [resolvable:$true] %s99
          %102 = dma.hbm_to_vmem [thread:$0]  %s98, 128, %s100, %s88
        $region20: #{tpu_custom_call.1} parent=15 // pred_fallthru
          _
      $region16: #{tpu_custom_call.1} parent=5 // pred_fallthru
        _
      %p103 = scmp.le.s32.totalorder 1, %s13
      %p104 = scmp.lt.s32.totalorder %s13, 3
      %p105 = pnand %p103, %p104
      %p106 = pneg %p105
      // Predicated region
      $region21: #{tpu_custom_call.1} parent=5 // pred_check
        _
      $region22: #{tpu_custom_call.1} parent=5 // pred_check_branch
        %108 = sbr.rel (%p105) target = $region24
      $region23: #{tpu_custom_call.1} parent=5 // pred_region
        %s109 = ssub.s32 %s13, 1
        %s110 = sand.u32 %s26, 1
        %s111 = scalar_lea.sflag [#allocation3], %s110
        %s112 = sand.u32 %s26, 1
        %s113 = smul.addr %s112, 8
        %s114 = scalar_lea.vmem [#allocation2], %s113
        // Predicated region
        $region25: #{tpu_custom_call.1} parent=23 // pred_check
          %p115 = pneg %p39
        $region26: #{tpu_custom_call.1} parent=23 // pred_check_branch
          %117 = sbr.rel (%p115) target = $region28
        $region27: #{tpu_custom_call.1} parent=23 // pred_region
          %119 = dma.done %s111, 128
        $region28: #{tpu_custom_call.1} parent=23 // pred_fallthru
          _
        %s120 = sand.u32 %s26, 1
        %s121 = scalar_lea.sflag [#allocation3], %s120
        %s122 = sand.u32 %s26, 1
        %s123 = smul.addr %s122, 8
        %s124 = scalar_lea.vmem [#allocation2], %s123
        %p125 = pneg %p39
        %p126 = pneg %p36
        %p127 = pneg %p65
        %p128 = pneg %p62
        %s129 = sand.u32 %s52, 1
        %s130 = scalar_lea.sflag [#allocation4], %s129
        %s131 = sand.u32 %s52, 1
        %s132 = smul.addr %s131, 8
        %s133 = scalar_lea.vmem [#allocation5], %s132
        %v134 = vld [vmem:[%s114] sm:$0xff]
        %v135 = vmul.f32 %v134, %v134
        %v136 = vadd.f32 %v135, 0.0
        %v137 = vadd.f32 %v136, 0.0
        %138 = vst [vmem:[%s133] sm:$0xff] %v137
        %s139 = sand.u32 %s52, 1
        %s140 = scalar_lea.sflag [#allocation4], %s139
        %s141 = sand.u32 %s52, 1
        %s142 = smul.addr %s141, 8
        %s143 = scalar_lea.vmem [#allocation5], %s142
        // Predicated region
        $region29: #{tpu_custom_call.1} parent=23 // pred_check
          %p144 = pneg %p62
        $region30: #{tpu_custom_call.1} parent=23 // pred_check_branch
          %146 = sbr.rel (%p144) target = $region32
        $region31: #{tpu_custom_call.1} parent=23 // pred_region
          %148 = vsyncadd %s140, 0
          %s149 = smul.addr %s18, 8
          %s150 = scalar_lea.hbm %s1, %s149
          %s152 = sshll.u32 %s143, 4
          %s153 = int_to_ptr.vmem [resolvable:$true] %s152
          %s154 = sshll.u32 %s150, 4
          %s155 = int_to_ptr.hbm [resolvable:$true] %s154
          %157 = dma.vmem_to_hbm [thread:$0]  %s153, 128, %s155, %s140
        $region32: #{tpu_custom_call.1} parent=23 // pred_fallthru
          _
      $region24: #{tpu_custom_call.1} parent=5 // pred_fallthru
        _
      %p158 = scmp.le.s32.totalorder 2, %s13
      // Predicated region
      $region33: #{tpu_custom_call.1} parent=5 // pred_check
        %p159 = pneg %p158
      $region34: #{tpu_custom_call.1} parent=5 // pred_check_branch
        %161 = sbr.rel (%p159) target = $region36
      $region35: #{tpu_custom_call.1} parent=5 // pred_region
        %s162 = ssub.s32 %s13, 2
        // Predicated region
        $region37: #{tpu_custom_call.1} parent=35 // pred_check
          %p163 = pneg %p68
        $region38: #{tpu_custom_call.1} parent=35 // pred_check_branch
          %165 = sbr.rel (%p163) target = $region40
        $region39: #{tpu_custom_call.1} parent=35 // pred_region
          %s166 = sand.u32 %s53, 1
          %s167 = scalar_lea.sflag [#allocation4], %s166
          %s168 = sand.u32 %s53, 1
          %s169 = smul.addr %s168, 8
          %s170 = scalar_lea.vmem [#allocation5], %s169
          %172 = dma.done %s167, 128
        $region40: #{tpu_custom_call.1} parent=35 // pred_fallthru
          _
      $region36: #{tpu_custom_call.1} parent=5 // pred_fallthru
        _
    $region6: #{tpu_custom_call.1} parent=1 // loop_footer
      %s17 = sadd.s32 1, %s13
    $region7: #{tpu_custom_call.1} parent=1 // loop_footer_branch
      %12 = sbr.rel target = $region3
    $region8: #{tpu_custom_call.1} parent=1 // loop_exit
      _
    %173 = vsyncpa [#allocation3], 1
    %s174 = scalar_lea.sflag [#allocation3], 1
    %175 = vsyncpa %s174, 1
    %176 = vsyncpa [#allocation4], 1
    %s177 = scalar_lea.sflag [#allocation4], 1
    %178 = vsyncpa %s177, 1

</llo_original>
